<compile_context>
chip_gen: v6e
topology: v6e:2x2x1
jax: 0.10.0
libtpu: 0.0.40
codegen_flags: <defaults>
</compile_context>

<pallas_src>
import numpy as np

import jax
import jax.numpy as jnp
from jax.experimental import pallas as pl
from jax.experimental.pallas import tpu as pltpu


# --- OGB bond feature dims (get_bond_feature_dims()) ------------------------
FULL_BOND_FEATURE_DIMS = (5, 6, 2)
NUM_BOND_FEATURES = len(FULL_BOND_FEATURE_DIMS)                       # 3
FEATURE_OFFSETS = tuple(
    int(sum(FULL_BOND_FEATURE_DIMS[:i])) for i in range(NUM_BOND_FEATURES)
)                                                                     # (0, 5, 11)
K_TOTAL = int(sum(FULL_BOND_FEATURE_DIMS))                            # 13


def _round_up(x, m):
    return ((x + m - 1) // m) * m


def _layout(emb_dim):
    """Packing layout: g edges per lane-dense output row, k_blk one-hot rows per edge."""
    if emb_dim <= 256 and 256 % emb_dim == 0:
        g = 256 // emb_dim          # 256-lane output rows: full-width MXU & stores
    elif emb_dim < 128 and 128 % emb_dim == 0:
        g = 128 // emb_dim
    else:
        g = 1                       # emb_dim already lane-dense (or not packable)
    k_blk = _round_up(K_TOTAL, 8)   # 16 — no 128//g floor (halves contraction K)
    return g, k_blk


def _bond_encoder_kernel(idx_ref, sel_ref, tgt_ref, table_ref, out_ref):
    """One grid step: embed + sum bond features for a tile of packed edges.

    idx_ref   : (tile_rows, g*3)      int32 — g edges' 3 features per row
    sel_ref   : (g*3, g*k_blk)        f32   — constant 0/1 feature->lane selector
    tgt_ref   : (1, g*k_blk)          f32   — per-lane expected value (-1e6 on pad lanes)
    table_ref : (g*k_blk, g*emb_dim)  f32   — block-diag replicated concat table
    out_ref   : (tile_rows, g*emb_dim) f32  — g packed edge embeddings per row
    """
    idx_f = idx_ref[...].astype(jnp.float32)
    # Tiny MXU matmul broadcasts each feature value onto the lanes its feature owns
    # (replaces g*3 unrolled compare/select/add chains on the VALU).
    expected = jnp.dot(idx_f, sel_ref[...], preferred_element_type=jnp.float32)
    # One compare + one select -> 0/1 multihot.
    multihot = (expected == tgt_ref[...]).astype(jnp.float32)
    # Single MXU matmul performs the gather AND the sum over the 3 feature tables.
    out_ref[...] = jnp.dot(
        multihot, table_ref[...], preferred_element_type=jnp.float32
    ).astype(out_ref.dtype)


def pack_bond_tables(tables, emb_dim):
    """Concat per-feature tables and replicate block-diagonally (done ONCE at init)."""
    g, k_blk = _layout(emb_dim)
    table_cat = jnp.concatenate([t.astype(jnp.float32) for t in tables], axis=0)
    packed = jnp.zeros((g * k_blk, g * emb_dim), jnp.float32)
    for j in range(g):
        packed = packed.at[j * k_blk:j * k_blk + K_TOTAL,
                           j * emb_dim:(j + 1) * emb_dim].set(table_cat)
    return packed


def build_selector(emb_dim):
    """Constant (g*3, g*k_blk) selector and (1, g*k_blk) per-lane target (built once)."""
    g, k_blk = _layout(emb_dim)
    k_tot = g * k_blk
    sel = np.zeros((g * NUM_BOND_FEATURES, k_tot), np.float32)
    tgt = np.full((1, k_tot), -1e6, np.float32)   # pad lanes never match (indices >= 0)
    for j in range(g):
        for f in range(NUM_BOND_FEATURES):
            base = j * k_blk + FEATURE_OFFSETS[f]
            for d in range(FULL_BOND_FEATURE_DIMS[f]):
                sel[j * NUM_BOND_FEATURES + f, base + d] = 1.0
                tgt[0, base + d] = float(d)
    return jnp.asarray(sel), jnp.asarray(tgt)


def init_bond_encoder(key, emb_dim):
    """xavier_uniform_ init of each nn.Embedding(dim_i, emb_dim).weight + packed params."""
    keys = jax.random.split(key, NUM_BOND_FEATURES)
    tables = []
    for k, dim in zip(keys, FULL_BOND_FEATURE_DIMS):
        bound = (6.0 / (dim + emb_dim)) ** 0.5
        tables.append(
            jax.random.uniform(k, (dim, emb_dim), jnp.float32, -bound, bound)
        )
    selector, lane_target = build_selector(emb_dim)
    return tables, pack_bond_tables(tables, emb_dim), selector, lane_target


def bond_encoder(edge_attr, packed_table, selector, lane_target, emb_dim, *,
                 tile_edges=8192):
    """Pallas implementation of BondEncoder.forward applied to batch.edge_attr.

    edge_attr : int [E, 3] OGB bond integer features
    returns   : f32 [E, emb_dim] summed per-feature embeddings
    """
    e, f = edge_attr.shape
    assert f == NUM_BOND_FEATURES
    g, k_blk = _layout(emb_dim)
    k_tot = g * k_blk
    lane_w = g * emb_dim
    assert packed_table.shape == (k_tot, lane_w)
    assert selector.shape == (g * f, k_tot)
    assert lane_target.shape == (1, k_tot)

    idx = edge_attr.astype(jnp.int32)
    e_pad = _round_up(e, g)               # pads at most g-1 edge rows
    if e_pad != e:
        idx = jnp.pad(idx, ((0, e_pad - e), (0, 0)))
    rows = e_pad // g
    idx_packed = idx.reshape(rows, g * f)  # free: row-major reinterpretation

    # --- tile sizing (perf review): big tiles, v5e-VMEM-safe, both v7x cores busy ---
    tile_rows = _round_up(max(tile_edges // g, 8), 8)
    vmem_cap_rows = max(8, ((2 << 20) // (lane_w * 4)) // 8 * 8)   # ~2 MiB output block
    tile_rows = min(tile_rows, vmem_cap_rows)
    tile_rows = min(tile_rows, max(8, _round_up(pl.cdiv(rows, 2), 8)))  # grid >= 2 if possible
    tile_rows = min(tile_rows, _round_up(rows, 8))
    grid = (pl.cdiv(rows, tile_rows),)

    cost = pl.CostEstimate(
        flops=int(2 * rows * (g * f) * k_tot + 2 * rows * k_tot * lane_w),
        transcendentals=0,
        bytes_accessed=int(idx_packed.size * 4 + rows * lane_w * 4
                           + packed_table.size * 4 + selector.size * 4
                           + lane_target.size * 4),
    )

    out = pl.pallas_call(
        _bond_encoder_kernel,
        out_shape=jax.ShapeDtypeStruct((rows, lane_w), jnp.float32),
        grid_spec=pltpu.PrefetchScalarGridSpec(
            num_scalar_prefetch=0,
            grid=grid,
            in_specs=[
                pl.BlockSpec((tile_rows, g * f), lambda i: (i, 0)),
                # Constant index_maps -> DMA'd once, VMEM-resident across the grid.
                pl.BlockSpec((g * f, k_tot), lambda i: (0, 0)),
                pl.BlockSpec((1, k_tot), lambda i: (0, 0)),
                pl.BlockSpec((k_tot, lane_w), lambda i: (0, 0)),
            ],
            out_specs=pl.BlockSpec((tile_rows, lane_w), lambda i: (i, 0)),
        ),
        compiler_params=pltpu.CompilerParams(
            dimension_semantics=("parallel",),   # edge tiles shard across TCs on v7x
        ),
        cost_estimate=cost,
    )(idx_packed, selector, lane_target, packed_table)

    out = out.reshape(e_pad, emb_dim)      # free: same row-major bytes, lane-packed
    return out if e_pad == e else out[:e]


if __name__ == "__main__":
    key = jax.random.PRNGKey(0)
    k_tab, k_attr = jax.random.split(key)

    emb_dim = 32
    num_edges = 64

    tables, packed_table, selector, lane_target = init_bond_encoder(k_tab, emb_dim)

    feat_keys = jax.random.split(k_attr, NUM_BOND_FEATURES)
    edge_attr = jnp.stack(
        [
            jax.random.randint(fk, (num_edges,), 0, dim, dtype=jnp.int32)
            for fk, dim in zip(feat_keys, FULL_BOND_FEATURE_DIMS)
        ],
        axis=1,
    )                                                       # int32 [64, 3]

    out = bond_encoder(edge_attr, packed_table, selector, lane_target, emb_dim)
    out = jax.block_until_ready(out)

    # Reference: plain-JAX per-feature embedding lookups, summed.
    ref = sum(
        jnp.take(tables[i], edge_attr[:, i], axis=0)
        for i in range(NUM_BOND_FEATURES)
    )
    assert out.shape == (num_edges, emb_dim)
    assert jnp.allclose(out, ref, atol=1e-5), "mismatch vs reference BondEncoder"

    print("KERNEL_OK")
</pallas_src>

<mosaic_0001>
module attributes {stable_mosaic.version = 11 : i64} {
  func.func @_bond_encoder_kernel(%arg0: i32, %arg1: memref<8x24xi32, #tpu.memory_space<vmem>>, %arg2: memref<24x128xf32, #tpu.memory_space<vmem>>, %arg3: memref<1x128xf32, #tpu.memory_space<vmem>>, %arg4: memref<128x256xf32, #tpu.memory_space<vmem>>, %arg5: memref<8x256xf32, #tpu.memory_space<vmem>>) attributes {dimension_semantics = [#tpu.dimension_semantics<parallel>], iteration_bounds = array<i64: 1>, scalar_prefetch = 0 : i64, scratch_operands = 0 : i64, tpu.core_type = #tpu.core_type<tc>, window_params = [{transform_indices = @transform_0, window_bounds = array<i64: 8, 24>}, {pipeline_mode = #tpu.pipeline_mode<synchronous>, transform_indices = @transform_1, window_bounds = array<i64: 24, 128>}, {pipeline_mode = #tpu.pipeline_mode<synchronous>, transform_indices = @transform_2, window_bounds = array<i64: 1, 128>}, {pipeline_mode = #tpu.pipeline_mode<synchronous>, transform_indices = @transform_3, window_bounds = array<i64: 128, 256>}, {transform_indices = @transform_4, window_bounds = array<i64: 8, 256>}]} {
    %c0 = arith.constant 0 : index
    %c0_0 = arith.constant 0 : index
    %0 = vector.load %arg1[%c0, %c0_0] : memref<8x24xi32, #tpu.memory_space<vmem>>, vector<8x24xi32>
    %1 = arith.sitofp %0 : vector<8x24xi32> to vector<8x24xf32>
    %c0_1 = arith.constant 0 : index
    %c0_2 = arith.constant 0 : index
    %2 = vector.load %arg2[%c0_1, %c0_2] : memref<24x128xf32, #tpu.memory_space<vmem>>, vector<24x128xf32>
    %cst = arith.constant dense<0.000000e+00> : vector<8x128xf32>
    %3 = tpu.matmul %1, %2, %cst {dimension_numbers = #tpu.dot_dimension_numbers<[1], [0], [0], [1], [0, 0, 1, 1], [], []>} : vector<8x24xf32>, vector<24x128xf32>, vector<8x128xf32> -> vector<8x128xf32>
    %c0_3 = arith.constant 0 : index
    %c0_4 = arith.constant 0 : index
    %4 = vector.load %arg3[%c0_3, %c0_4] : memref<1x128xf32, #tpu.memory_space<vmem>>, vector<1x128xf32>
    %5 = vector.broadcast %4 : vector<1x128xf32> to vector<8x128xf32>
    %6 = arith.cmpf oeq, %3, %5 : vector<8x128xf32>
    %7 = arith.extui %6 : vector<8x128xi1> to vector<8x128xi32>
    %8 = arith.sitofp %7 : vector<8x128xi32> to vector<8x128xf32>
    %c0_5 = arith.constant 0 : index
    %c0_6 = arith.constant 0 : index
    %9 = vector.load %arg4[%c0_5, %c0_6] : memref<128x256xf32, #tpu.memory_space<vmem>>, vector<128x256xf32>
    %cst_7 = arith.constant dense<0.000000e+00> : vector<8x256xf32>
    %10 = tpu.matmul %8, %9, %cst_7 {dimension_numbers = #tpu.dot_dimension_numbers<[1], [0], [0], [1], [0, 0, 1, 1], [], []>} : vector<8x128xf32>, vector<128x256xf32>, vector<8x256xf32> -> vector<8x256xf32>
    %c0_8 = arith.constant 0 : index
    %c0_9 = arith.constant 0 : index
    %11 = vector.load %arg5[%c0_8, %c0_9] : memref<8x256xf32, #tpu.memory_space<vmem>>, vector<8x256xf32>
    tpu.vector_store %arg5[%c0_8, %c0_9], %10 {strides = array<i32>} : memref<8x256xf32, #tpu.memory_space<vmem>>, vector<8x256xf32>,
    return
  }
  func.func @transform_0(%arg0: i32) -> (i32, i32) {
    %c0_i32 = arith.constant 0 : i32
    %c0_i32_0 = arith.constant 0 : i32
    return %arg0, %c0_i32 : i32, i32
  }
  func.func @transform_1(%arg0: i32) -> (i32, i32) {
    %c0_i32 = arith.constant 0 : i32
    %c0_i32_0 = arith.constant 0 : i32
    %c0_i32_1 = arith.constant 0 : i32
    return %c0_i32, %c0_i32_0 : i32, i32
  }
  func.func @transform_2(%arg0: i32) -> (i32, i32) {
    %c0_i32 = arith.constant 0 : i32
    %c0_i32_0 = arith.constant 0 : i32
    %c0_i32_1 = arith.constant 0 : i32
    return %c0_i32, %c0_i32_0 : i32, i32
  }
  func.func @transform_3(%arg0: i32) -> (i32, i32) {
    %c0_i32 = arith.constant 0 : i32
    %c0_i32_0 = arith.constant 0 : i32
    %c0_i32_1 = arith.constant 0 : i32
    return %c0_i32, %c0_i32_0 : i32, i32
  }
  func.func @transform_4(%arg0: i32) -> (i32, i32) {
    %c0_i32 = arith.constant 0 : i32
    %c0_i32_0 = arith.constant 0 : i32
    return %arg0, %c0_i32 : i32, i32
  }
}

</mosaic_0001>

<llo_original>
// kernel: tpu_custom_call.1
$region0: #{tpu_custom_call.1}
  #allocation0 [shape = 'u32[]', space=smem, size = 0x4, offset = 0x4, fixed_abs, tag = 'smem constant byte address 0x4 - core index']
  #allocation1 [shape = 'u32[144,128]{1,0:T(1,128)}', space=vmem, size = 0x12000, scoped, tag = 'internal scratch']
  %s0 = inlined_call_operand.hbm [shape: s32[8,24], index: 0, kind: input, shape index: {}]
  %s1 = inlined_call_operand.hbm [shape: f32[24,128], index: 1, kind: input, shape index: {}]
  %s2 = inlined_call_operand.vmem [shape: f32[1,128], index: 2, kind: input, shape index: {}]
  %s3 = inlined_call_operand.hbm [shape: f32[128,256], index: 3, kind: input, shape index: {}]
  %s4 = inlined_call_operand.hbm [shape: f32[8,256], index: 4, kind: output, shape index: {}]
  %s5 = sld [smem:[#allocation0]]
  $region38: #{tpu_custom_call.1} parent=0
    _
  %s7 = ssub.s32 1, %s5
  %s8 = scalar_select 0, %s7, %s5
  $region1: #{tpu_custom_call.1} parent=0
    #allocation2 [shape = 'u8[4096]{0}', space=vmem, size = 0x1000, scoped, tag = 'input window, operand 0, single buffered']
    #allocation3 [shape = 's32[1]{0}', space=sflag, size = 0x4, scoped, tag = 'scoped memory for tpu_custom_call.1']
    #allocation4 [shape = 's32[1]{0}', space=sflag, size = 0x4, scoped, tag = 'scoped memory for tpu_custom_call.1']
    #allocation5 [shape = 'u8[12288]{0}', space=vmem, size = 0x3000, scoped, tag = 'input window, operand 1, single buffered']
    #allocation6 [shape = 's32[1]{0}', space=sflag, size = 0x4, scoped, tag = 'scoped memory for tpu_custom_call.1']
    #allocation7 [shape = 'u8[131072]{0}', space=vmem, size = 0x20000, scoped, tag = 'input window, operand 3, single buffered']
    #allocation8 [shape = 'u8[8192]{0}', space=vmem, size = 0x2000, scoped, tag = 'output window, operand 0, single buffered']
    %9 = vsyncpa [#allocation3], 0
    %10 = vsyncpa [#allocation6], 0
    %11 = vsyncpa [#allocation4], 0
    // Predicated region
    $region2: #{tpu_custom_call.1} parent=1 // pred_check
      _
    $region3: #{tpu_custom_call.1} parent=1 // pred_check_branch
      %13 = sbr.rel (0) target = $region5
    $region4: #{tpu_custom_call.1} parent=1 // pred_region
      %s15 = ssub.s32 128, 128
      %16 = vsyncadd [#allocation3], %s15
      %s18 = sshll.u32 [#allocation2], 4
      %s19 = int_to_ptr.vmem [resolvable:$true] %s18
      %21 = dma.hbm_to_vmem [thread:$0]  %s0, 128, %s19, [#allocation3]
    $region5: #{tpu_custom_call.1} parent=1 // pred_fallthru
      _
    // Predicated region
    $region6: #{tpu_custom_call.1} parent=1 // pred_check
      _
    $region7: #{tpu_custom_call.1} parent=1 // pred_check_branch
      %23 = sbr.rel (0) target = $region9
    $region8: #{tpu_custom_call.1} parent=1 // pred_region
      %s25 = ssub.s32 384, 384
      %26 = vsyncadd [#allocation6], %s25
      %s27 = sshll.u32 [#allocation5], 4
      %s28 = int_to_ptr.vmem [resolvable:$true] %s27
      %33 = dma.hbm_to_vmem [thread:$0]  %s1, 384, %s28, [#allocation6], 128, 128, 8
    $region9: #{tpu_custom_call.1} parent=1 // pred_fallthru
      _
    // Predicated region
    $region10: #{tpu_custom_call.1} parent=1 // pred_check
      _
    $region11: #{tpu_custom_call.1} parent=1 // pred_check_branch
      %35 = sbr.rel (0) target = $region13
    $region12: #{tpu_custom_call.1} parent=1 // pred_region
      _
    $region13: #{tpu_custom_call.1} parent=1 // pred_fallthru
      _
    // Predicated region
    $region14: #{tpu_custom_call.1} parent=1 // pred_check
      _
    $region15: #{tpu_custom_call.1} parent=1 // pred_check_branch
      %37 = sbr.rel (0) target = $region17
    $region16: #{tpu_custom_call.1} parent=1 // pred_region
      %s39 = ssub.s32 4096, 4096
      %40 = vsyncadd [#allocation6], %s39
      %s41 = sshll.u32 [#allocation7], 4
      %s42 = int_to_ptr.vmem [resolvable:$true] %s41
      %47 = dma.hbm_to_vmem [thread:$0]  %s3, 4096, %s42, [#allocation6], 256, 256, 16
    $region17: #{tpu_custom_call.1} parent=1 // pred_fallthru
      _
    // Predicated region
    $region18: #{tpu_custom_call.1} parent=1 // pred_check
      _
    $region19: #{tpu_custom_call.1} parent=1 // pred_check_branch
      %49 = sbr.rel (0) target = $region21
    $region20: #{tpu_custom_call.1} parent=1 // pred_region
      %50 = dma.done [#allocation3], 128
    $region21: #{tpu_custom_call.1} parent=1 // pred_fallthru
      _
    // Predicated region
    $region22: #{tpu_custom_call.1} parent=1 // pred_check
      _
    $region23: #{tpu_custom_call.1} parent=1 // pred_check_branch
      %52 = sbr.rel (0) target = $region25
    $region24: #{tpu_custom_call.1} parent=1 // pred_region
      %53 = dma.done [#allocation6], 384
    $region25: #{tpu_custom_call.1} parent=1 // pred_fallthru
      _
    // Predicated region
    $region26: #{tpu_custom_call.1} parent=1 // pred_check
      _
    $region27: #{tpu_custom_call.1} parent=1 // pred_check_branch
      %55 = sbr.rel (0) target = $region29
    $region28: #{tpu_custom_call.1} parent=1 // pred_region
      %56 = dma.done [#allocation6], 4096
    $region29: #{tpu_custom_call.1} parent=1 // pred_fallthru
      _
    %v57 = vld [vmem:[#allocation2] sm:$0xff]
    %v58 = vcvt.s32.f32 %v57
    %v59 = vld [vmem:[#allocation5] sm:$0xff]
    %v60 = vld [vmem:[#allocation5 + $0x8] sm:$0xff]
    %v61 = vld [vmem:[#allocation5 + $0x10] sm:$0xff]
    %vm62 = vcmask 195584
    %v64 = vsel %vm62, %v58, 0
    %66 = vmatprep.subr.mxu0 0.0
    %67 = vmatpush1.msra.mxu0 0.0
    %68 = vmatprep.subr.mxu0 0.0
    %69 = vmatpush1.msra.mxu0 0.0
    %70 = vmatprep.subr.mxu0 0.0
    %71 = vmatpush1.msra.mxu0 0.0
    %72 = vmatprep.subr.mxu0 0.0
    %73 = vmatpush1.msra.mxu0 0.0
    %74 = vmatprep.subr.mxu0 0.0
    %75 = vmatpush1.msra.mxu0 0.0
    %76 = vmatprep.subr.mxu0 0.0
    %77 = vmatpush1.msra.mxu0 0.0
    %78 = vmatprep.subr.mxu0 0.0
    %79 = vmatpush1.msra.mxu0 0.0
    %80 = vmatprep.subr.mxu0 0.0
    %81 = vmatpush1.msra.mxu0 0.0
    %82 = vmatprep.subr.mxu0 0.0
    %83 = vmatpush1.msra.mxu0 0.0
    %84 = vmatprep.subr.mxu0 0.0
    %85 = vmatpush1.msra.mxu0 0.0
    %86 = vmatprep.subr.mxu0 0.0
    %87 = vmatpush1.msra.mxu0 0.0
    %88 = vmatprep.subr.mxu0 0.0
    %89 = vmatpush1.msra.mxu0 0.0
    %90 = vmatprep.subr.mxu0 0.0
    %91 = vmatpush1.msra.mxu0 0.0
    %92 = vmatprep.subr.mxu0 0.0
    %93 = vmatpush1.msra.mxu0 %v61
    %94 = vmatprep.subr.mxu0 0.0
    %95 = vmatpush1.msra.mxu0 %v60
    %96 = vmatprep.subr.mxu0 0.0
    %97 = vmatpush1.msra.mxu0 %v59
    %98 = vmatprep.subr.mxu0 0.0
    %99 = vmatpush2.msra.mxu0 0.0
    %100 = vmatprep.subr.mxu0 0.0
    %101 = vmatpush2.msra.mxu0 0.0
    %102 = vmatprep.subr.mxu0 0.0
    %103 = vmatpush2.msra.mxu0 0.0
    %104 = vmatprep.subr.mxu0 0.0
    %105 = vmatpush2.msra.mxu0 0.0
    %106 = vmatprep.subr.mxu0 0.0
    %107 = vmatpush2.msra.mxu0 0.0
    %108 = vmatprep.subr.mxu0 0.0
    %109 = vmatpush2.msra.mxu0 0.0
    %110 = vmatprep.subr.mxu0 0.0
    %111 = vmatpush2.msra.mxu0 0.0
    %112 = vmatprep.subr.mxu0 0.0
    %113 = vmatpush2.msra.mxu0 0.0
    %114 = vmatprep.subr.mxu0 0.0
    %115 = vmatpush2.msra.mxu0 0.0
    %116 = vmatprep.subr.mxu0 0.0
    %117 = vmatpush2.msra.mxu0 0.0
    %118 = vmatprep.subr.mxu0 0.0
    %119 = vmatpush2.msra.mxu0 0.0
    %120 = vmatprep.subr.mxu0 0.0
    %121 = vmatpush2.msra.mxu0 0.0
    %122 = vmatprep.subr.mxu0 0.0
    %123 = vmatpush2.msra.mxu0 0.0
    %124 = vmatprep.subr.mxu0 0.0
    %125 = vmatpush2.msra.mxu0 0.0
    %126 = vmatprep.subr.mxu0 0.0
    %127 = vmatpush2.msra.mxu0 0.0
    %128 = vmatprep.subr.mxu0 0.0
    %129 = vmatpush2.msra.mxu0 0.0
    %130 = vmatprep.mubr.f32.mxu0 0.0
    %131 = vmatmul.mubr.f32.gmra.mxu0 %v64
    %v132 = vpop.f32.mrf.mxu0
    %v133 = vadd.f32 0.0, %v132
    %v134 = vpop.f32.mrf.mxu0
    %135 = vdwg.mxu0
    %v136 = vld [vmem:[%s2] sm:$0x1]
    %v138 = vlaneseq
    %v139 = vshrl.u32 %v138, 7
    %v140 = vsub.s32 0, %v139
    %v141 = vrot.slane %v136, %v140
    %vm143 = vcmp.eq.f32.partialorder %v133, %v141
    %v144 = vsel %vm143, 1, 0
    %v145 = vcvt.s32.f32 %v144
    %v146 = vld [vmem:[#allocation7] sm:$0xff]
    %v147 = vld [vmem:[#allocation7 + $0x8] sm:$0xff]
    %v148 = vld [vmem:[#allocation7 + $0x10] sm:$0xff]
    %v149 = vld [vmem:[#allocation7 + $0x18] sm:$0xff]
    %v150 = vld [vmem:[#allocation7 + $0x20] sm:$0xff]
    %v151 = vld [vmem:[#allocation7 + $0x28] sm:$0xff]
    %v152 = vld [vmem:[#allocation7 + $0x30] sm:$0xff]
    %v153 = vld [vmem:[#allocation7 + $0x38] sm:$0xff]
    %v154 = vld [vmem:[#allocation7 + $0x40] sm:$0xff]
    %v155 = vld [vmem:[#allocation7 + $0x48] sm:$0xff]
    %v156 = vld [vmem:[#allocation7 + $0x50] sm:$0xff]
    %v157 = vld [vmem:[#allocation7 + $0x58] sm:$0xff]
    %v158 = vld [vmem:[#allocation7 + $0x60] sm:$0xff]
    %v159 = vld [vmem:[#allocation7 + $0x68] sm:$0xff]
    %v160 = vld [vmem:[#allocation7 + $0x70] sm:$0xff]
    %v161 = vld [vmem:[#allocation7 + $0x78] sm:$0xff]
    %v162 = vld [vmem:[#allocation7 + $0x80] sm:$0xff]
    %v163 = vld [vmem:[#allocation7 + $0x88] sm:$0xff]
    %v164 = vld [vmem:[#allocation7 + $0x90] sm:$0xff]
    %v165 = vld [vmem:[#allocation7 + $0x98] sm:$0xff]
    %v166 = vld [vmem:[#allocation7 + $0xa0] sm:$0xff]
    %v167 = vld [vmem:[#allocation7 + $0xa8] sm:$0xff]
    %v168 = vld [vmem:[#allocation7 + $0xb0] sm:$0xff]
    %v169 = vld [vmem:[#allocation7 + $0xb8] sm:$0xff]
    %v170 = vld [vmem:[#allocation7 + $0xc0] sm:$0xff]
    %v171 = vld [vmem:[#allocation7 + $0xc8] sm:$0xff]
    %v172 = vld [vmem:[#allocation7 + $0xd0] sm:$0xff]
    %v173 = vld [vmem:[#allocation7 + $0xd8] sm:$0xff]
    %v174 = vld [vmem:[#allocation7 + $0xe0] sm:$0xff]
    %v175 = vld [vmem:[#allocation7 + $0xe8] sm:$0xff]
    %v176 = vld [vmem:[#allocation7 + $0xf0] sm:$0xff]
    %v177 = vld [vmem:[#allocation7 + $0xf8] sm:$0xff]
    %178 = vmatprep.subr.mxu0 %v177
    %179 = vmatpush1.msra.mxu0 %v176
    %180 = vmatprep.subr.mxu0 %v175
    %181 = vmatpush1.msra.mxu0 %v174
    %182 = vmatprep.subr.mxu0 %v173
    %183 = vmatpush1.msra.mxu0 %v172
    %184 = vmatprep.subr.mxu0 %v171
    %185 = vmatpush1.msra.mxu0 %v170
    %186 = vmatprep.subr.mxu0 %v169
    %187 = vmatpush1.msra.mxu0 %v168
    %188 = vmatprep.subr.mxu0 %v167
    %189 = vmatpush1.msra.mxu0 %v166
    %190 = vmatprep.subr.mxu0 %v165
    %191 = vmatpush1.msra.mxu0 %v164
    %192 = vmatprep.subr.mxu0 %v163
    %193 = vmatpush1.msra.mxu0 %v162
    %194 = vmatprep.subr.mxu0 %v161
    %195 = vmatpush1.msra.mxu0 %v160
    %196 = vmatprep.subr.mxu0 %v159
    %197 = vmatpush1.msra.mxu0 %v158
    %198 = vmatprep.subr.mxu0 %v157
    %199 = vmatpush1.msra.mxu0 %v156
    %200 = vmatprep.subr.mxu0 %v155
    %201 = vmatpush1.msra.mxu0 %v154
    %202 = vmatprep.subr.mxu0 %v153
    %203 = vmatpush1.msra.mxu0 %v152
    %204 = vmatprep.subr.mxu0 %v151
    %205 = vmatpush1.msra.mxu0 %v150
    %206 = vmatprep.subr.mxu0 %v149
    %207 = vmatpush1.msra.mxu0 %v148
    %208 = vmatprep.subr.mxu0 %v147
    %209 = vmatpush1.msra.mxu0 %v146
    %210 = vmatprep.subr.mxu0 0.0
    %211 = vmatpush2.msra.mxu0 0.0
    %212 = vmatprep.subr.mxu0 0.0
    %213 = vmatpush2.msra.mxu0 0.0
    %214 = vmatprep.subr.mxu0 0.0
    %215 = vmatpush2.msra.mxu0 0.0
    %216 = vmatprep.subr.mxu0 0.0
    %217 = vmatpush2.msra.mxu0 0.0
    %218 = vmatprep.subr.mxu0 0.0
    %219 = vmatpush2.msra.mxu0 0.0
    %220 = vmatprep.subr.mxu0 0.0
    %221 = vmatpush2.msra.mxu0 0.0
    %222 = vmatprep.subr.mxu0 0.0
    %223 = vmatpush2.msra.mxu0 0.0
    %224 = vmatprep.subr.mxu0 0.0
    %225 = vmatpush2.msra.mxu0 0.0
    %226 = vmatprep.subr.mxu0 0.0
    %227 = vmatpush2.msra.mxu0 0.0
    %228 = vmatprep.subr.mxu0 0.0
    %229 = vmatpush2.msra.mxu0 0.0
    %230 = vmatprep.subr.mxu0 0.0
    %231 = vmatpush2.msra.mxu0 0.0
    %232 = vmatprep.subr.mxu0 0.0
    %233 = vmatpush2.msra.mxu0 0.0
    %234 = vmatprep.subr.mxu0 0.0
    %235 = vmatpush2.msra.mxu0 0.0
    %236 = vmatprep.subr.mxu0 0.0
    %237 = vmatpush2.msra.mxu0 0.0
    %238 = vmatprep.subr.mxu0 0.0
    %239 = vmatpush2.msra.mxu0 0.0
    %240 = vmatprep.subr.mxu0 0.0
    %241 = vmatpush2.msra.mxu0 0.0
    %242 = vmatprep.mubr.f32.mxu0 0.0
    %243 = vmatmul.mubr.f32.gmra.mxu0 %v145
    %v244 = vpop.f32.mrf.mxu0
    %v245 = vadd.f32 0.0, %v244
    %v246 = vpop.f32.mrf.mxu0
    %v247 = vadd.f32 0.0, %v246
    %248 = vdwg.mxu0
    %249 = vst [vmem:[#allocation8] sm:$0xff] %v245
    %250 = vst [vmem:[#allocation8 + $0x8] sm:$0xff] %v247
    // Predicated region
    $region30: #{tpu_custom_call.1} parent=1 // pred_check
      _
    $region31: #{tpu_custom_call.1} parent=1 // pred_check_branch
      %252 = sbr.rel (0) target = $region33
    $region32: #{tpu_custom_call.1} parent=1 // pred_region
      %s254 = ssub.s32 256, 256
      %255 = vsyncadd [#allocation4], %s254
      %s257 = sshll.u32 [#allocation8], 4
      %s258 = int_to_ptr.vmem [resolvable:$true] %s257
      %260 = dma.vmem_to_hbm [thread:$0]  %s258, 256, %s4, [#allocation4]
    $region33: #{tpu_custom_call.1} parent=1 // pred_fallthru
      _
    // Predicated region
    $region34: #{tpu_custom_call.1} parent=1 // pred_check
      _
    $region35: #{tpu_custom_call.1} parent=1 // pred_check_branch
      %262 = sbr.rel (0) target = $region37
    $region36: #{tpu_custom_call.1} parent=1 // pred_region
      %263 = dma.done [#allocation4], 256
    $region37: #{tpu_custom_call.1} parent=1 // pred_fallthru
      _
    %264 = vsyncpa [#allocation3], 1
    %265 = vsyncpa [#allocation6], 1
    %266 = vsyncpa [#allocation4], 1

</llo_original>
